<compile_context>
chip_gen: v7x
topology: tpu7x:2x2x1
jax: 0.10.0
libtpu: 0.0.40
codegen_flags: <defaults>
</compile_context>

<pallas_src>
import math

import jax
import jax.numpy as jnp
from jax.experimental import pallas as pl
from jax.experimental.pallas import tpu as pltpu


def _round_up(x: int, m: int) -> int:
    return ((x + m - 1) // m) * m


def _vmem_limit_bytes() -> int:
    """Generation-aware scoped-VMEM limit: 3/4 of physical, capped at 64 MiB.
    v7x (64 MiB physical) -> 48 MiB; v5e/v6e (128 MiB) -> 64 MiB."""
    try:
        cap = pltpu.get_tpu_info().vmem_capacity_bytes
    except Exception:
        cap = 64 << 20  # conservative (v7x-sized) fallback
    return min((3 * cap) // 4, 64 << 20)


def _row_align(itemsize: int) -> int:
    """Sublane alignment per dtype: f32 packs (8,128) per vreg, bf16 (16,128),
    int8/fp8 (32,128)."""
    return max(8, 32 // max(itemsize, 1))


def _fusion_factor(n_feat: int, itemsize: int, block_budget: int) -> int:
    """k such that folding k logical rows into one physical row makes the lane
    (last) dim a multiple of 128 -> lane-dense, unmasked vector stores.  Exact
    for a row-major contiguous input because the op is elementwise and the
    per-column mask simply tiles."""
    if n_feat % 128 == 0:
        return 1
    k = 128 // math.gcd(n_feat, 128)
    # Guard: never fold if a single folded row (times the minimum sublane
    # count) would already exceed the per-block budget.
    if k * n_feat * itemsize * _row_align(itemsize) > block_budget:
        return 1
    return k


def _pick_row_tile(nr: int, width: int, itemsize: int, block_budget: int) -> int:
    """Largest sublane-aligned row tile whose block fits in block_budget bytes.
    The grid uses pl.cdiv, so the tile does NOT need to divide nr (partial
    boundary blocks are safe for an elementwise op)."""
    align = _row_align(itemsize)
    if nr <= align:
        return nr  # full-extent block: exempt from the (8,128) rule
    bytes_per_row = max(width * itemsize, 1)
    rows = (block_budget // bytes_per_row) // align * align
    rows = max(rows, align)
    return min(rows, (nr // align) * align)


def make_tanh_transform(mask, norm: float = 1.0):
    """Pallas implementation of TanhTransform.forward.

    mask: per-feature booleans (length F).  norm: scalar divisor.
    Output: same shape/dtype as x; tanh(x / norm) on masked columns, x elsewhere.
    """
    mask = [bool(m) for m in mask]
    n_feat = len(mask)
    inv_norm = 1.0 / float(norm)
    all_on = all(mask)
    none_on = not any(mask)

    def forward(x):
        assert x.ndim == 2 and x.shape[1] == n_feat, (x.shape, n_feat)
        if none_on:
            return x  # identity on every column; nothing to compute

        n_rows = x.shape[0]
        out_dtype = x.dtype
        itemsize = jnp.dtype(x.dtype).itemsize

        vmem_limit = _vmem_limit_bytes()
        # Double-buffered in + out = 4 live blocks -> keep 4*block <= limit/2.
        block_budget = max(vmem_limit // 8, 512 << 10)

        # Lane-dense packing: fold k rows so the last dim is a multiple of 128.
        # Pad rows (cheap, <= k-1 <= 127 extra rows) when k does not divide N.
        k = _fusion_factor(n_feat, itemsize, block_budget)
        n_rows_p = _round_up(n_rows, k)
        xp = x if n_rows_p == n_rows else jnp.pad(
            x, ((0, n_rows_p - n_rows), (0, 0)))
        width = k * n_feat
        nr = n_rows_p // k
        xv = xp.reshape(nr, width)

        rows = _pick_row_tile(nr, width, itemsize, block_budget)
        grid = (pl.cdiv(nr, rows),)

        compiler_params = pltpu.CompilerParams(
            dimension_semantics=("parallel",),  # megacore sharding on v7x
            vmem_limit_bytes=vmem_limit,
        )

        if all_on:
            # Specialized: no mask stream, no compare/select.
            def kernel_all(x_ref, o_ref):
                xb = x_ref[...]
                o_ref[...] = jnp.tanh(
                    xb.astype(jnp.float32) * jnp.float32(inv_norm)
                ).astype(out_dtype)

            out = pl.pallas_call(
                kernel_all,
                out_shape=jax.ShapeDtypeStruct((nr, width), out_dtype),
                grid=grid,
                in_specs=[pl.BlockSpec((rows, width), lambda i: (i, 0))],
                out_specs=pl.BlockSpec((rows, width), lambda i: (i, 0)),
                compiler_params=compiler_params,
            )(xv)
        else:
            mask_row = jnp.tile(
                jnp.asarray(mask, dtype=jnp.float32).reshape(1, n_feat), (1, k))

            def kernel_mixed(x_ref, m_ref, o_ref):
                xb = x_ref[...]                                         # native dtype
                t = jnp.tanh(xb.astype(jnp.float32) * jnp.float32(inv_norm))  # EUP
                o_ref[...] = jnp.where(m_ref[...] != 0.0, t.astype(out_dtype), xb)

            out = pl.pallas_call(
                kernel_mixed,
                out_shape=jax.ShapeDtypeStruct((nr, width), out_dtype),
                grid=grid,
                in_specs=[
                    pl.BlockSpec((rows, width), lambda i: (i, 0)),
                    # Constant block index -> resident, DMA'd once.
                    pl.BlockSpec((1, width), lambda i: (0, 0)),
                ],
                out_specs=pl.BlockSpec((rows, width), lambda i: (i, 0)),
                compiler_params=compiler_params,
            )(xv, mask_row)

        out = out.reshape(n_rows_p, n_feat)
        return out[:n_rows] if n_rows_p != n_rows else out

    return forward


def reference_tanh_transform(x, mask, norm=1.0):
    """Pure-JAX reference mirroring the PyTorch forward (computed in f32)."""
    mask_b = jnp.asarray(mask, dtype=bool).reshape(1, -1)
    xf = x.astype(jnp.float32)
    return jnp.where(mask_b, jnp.tanh(xf / jnp.float32(norm)), xf).astype(x.dtype)


if __name__ == "__main__":
    key = jax.random.PRNGKey(0)
    k1, k2 = jax.random.split(key)

    # Case 1: mixed mask, nice shape (exercises the fold path, single block).
    N1, F1 = 256, 32
    mask1 = [(j % 2 == 0) for j in range(F1)]
    norm1 = 2.0
    x1 = 3.0 * jax.random.normal(k1, (N1, F1), dtype=jnp.float32)
    fwd1 = make_tanh_transform(mask1, norm1)
    out1 = jax.block_until_ready(fwd1(x1))
    ref1 = reference_tanh_transform(x1, mask1, norm1)
    assert out1.shape == x1.shape and out1.dtype == x1.dtype
    assert jnp.allclose(out1, ref1, atol=1e-5, rtol=1e-5), "case1 mismatch"

    # Case 2: all-True mask, awkward row count (exercises row padding for the
    # lane-dense fold + cdiv partial blocks + the specialized tanh-only kernel).
    N2, F2 = 250, 20
    mask2 = [True] * F2
    norm2 = 1.5
    x2 = 2.0 * jax.random.normal(k2, (N2, F2), dtype=jnp.float32)
    fwd2 = make_tanh_transform(mask2, norm2)
    out2 = jax.block_until_ready(fwd2(x2))
    ref2 = reference_tanh_transform(x2, mask2, norm2)
    assert out2.shape == x2.shape and out2.dtype == x2.dtype
    assert jnp.allclose(out2, ref2, atol=1e-5, rtol=1e-5), "case2 mismatch"

    # Case 3: all-False mask -> pure identity, no kernel launch.
    fwd3 = make_tanh_transform([False] * F1, norm1)
    out3 = jax.block_until_ready(fwd3(x1))
    assert jnp.array_equal(out3, x1), "case3 mismatch"

    print("KERNEL_OK")
</pallas_src>

<mosaic_0001>
module attributes {stable_mosaic.version = 11 : i64} {
  func.func @kernel_mixed(%arg0: i32, %arg1: memref<64x128xf32, #tpu.memory_space<vmem>>, %arg2: memref<1x128xf32, #tpu.memory_space<vmem>>, %arg3: memref<64x128xf32, #tpu.memory_space<vmem>>) attributes {dimension_semantics = [#tpu.dimension_semantics<parallel>], iteration_bounds = array<i64: 1>, scalar_prefetch = 0 : i64, scratch_operands = 0 : i64, tpu.core_type = #tpu.core_type<tc>, window_params = [{transform_indices = @transform_0, window_bounds = array<i64: 64, 128>}, {pipeline_mode = #tpu.pipeline_mode<synchronous>, transform_indices = @transform_1, window_bounds = array<i64: 1, 128>}, {transform_indices = @transform_2, window_bounds = array<i64: 64, 128>}]} {
    %c0 = arith.constant 0 : index
    %c0_0 = arith.constant 0 : index
    %0 = vector.load %arg1[%c0, %c0_0] : memref<64x128xf32, #tpu.memory_space<vmem>>, vector<64x128xf32>
    %cst = arith.constant 5.000000e-01 : f32
    %1 = vector.broadcast %cst : f32 to vector<64x128xf32>
    %2 = arith.mulf %0, %1 : vector<64x128xf32>
    %3 = math.tanh %2 : vector<64x128xf32>
    %c0_1 = arith.constant 0 : index
    %c0_2 = arith.constant 0 : index
    %4 = vector.load %arg2[%c0_1, %c0_2] : memref<1x128xf32, #tpu.memory_space<vmem>>, vector<1x128xf32>
    %cst_3 = arith.constant 0.000000e+00 : f32
    %5 = vector.broadcast %cst_3 : f32 to vector<1x128xf32>
    %6 = arith.cmpf one, %4, %5 : vector<1x128xf32>
    %7 = vector.shape_cast %6 : vector<1x128xi1> to vector<1x128xi1>
    %8 = vector.broadcast %7 : vector<1x128xi1> to vector<64x128xi1>
    %9 = arith.select %8, %3, %0 : vector<64x128xi1>, vector<64x128xf32>
    %c0_4 = arith.constant 0 : index
    %c0_5 = arith.constant 0 : index
    %10 = vector.load %arg3[%c0_4, %c0_5] : memref<64x128xf32, #tpu.memory_space<vmem>>, vector<64x128xf32>
    tpu.vector_store %arg3[%c0_4, %c0_5], %9 {strides = array<i32>} : memref<64x128xf32, #tpu.memory_space<vmem>>, vector<64x128xf32>,
    return
  }
  func.func @transform_0(%arg0: i32) -> (i32, i32) {
    %c0_i32 = arith.constant 0 : i32
    %c0_i32_0 = arith.constant 0 : i32
    return %arg0, %c0_i32 : i32, i32
  }
  func.func @transform_1(%arg0: i32) -> (i32, i32) {
    %c0_i32 = arith.constant 0 : i32
    %c0_i32_0 = arith.constant 0 : i32
    %c0_i32_1 = arith.constant 0 : i32
    return %c0_i32, %c0_i32_0 : i32, i32
  }
  func.func @transform_2(%arg0: i32) -> (i32, i32) {
    %c0_i32 = arith.constant 0 : i32
    %c0_i32_0 = arith.constant 0 : i32
    return %arg0, %c0_i32 : i32, i32
  }
}

</mosaic_0001>

<llo_original>
// kernel: tpu_custom_call.1
$region0: #{tpu_custom_call.1}
  #allocation0 [shape = 'u32[]', space=smem, size = 0x4, offset = 0x4, fixed_abs, tag = 'smem constant byte address 0x4 - core index']
  #allocation1 [shape = 'u32[144,128]{1,0:T(1,128)}', space=vmem, size = 0x12000, scoped, tag = 'internal scratch']
  %s0 = inlined_call_operand.hbm [shape: f32[64,128], index: 0, kind: input, shape index: {}]
  %s1 = inlined_call_operand.vmem [shape: f32[1,128], index: 1, kind: input, shape index: {}]
  %s2 = inlined_call_operand.hbm [shape: f32[64,128], index: 2, kind: output, shape index: {}]
  %s3 = sld [smem:[#allocation0]]
  $region22: #{tpu_custom_call.1} parent=0
    _
  %s5 = ssub.s32 1, %s3
  %s6 = scalar_select 0, %s5, %s3
  $region1: #{tpu_custom_call.1} parent=0
    #allocation2 [shape = 'u8[32768]{0}', space=vmem, size = 0x8000, scoped, tag = 'input window, operand 0, single buffered']
    #allocation3 [shape = 's32[1]{0}', space=sflag, size = 0x4, scoped, tag = 'scoped memory for tpu_custom_call.1']
    #allocation4 [shape = 's32[1]{0}', space=sflag, size = 0x4, scoped, tag = 'scoped memory for tpu_custom_call.1']
    #allocation5 [shape = 'u8[32768]{0}', space=vmem, size = 0x8000, scoped, tag = 'output window, operand 0, single buffered']
    %7 = vsyncpa [#allocation3], 0
    %8 = vsyncpa [#allocation4], 0
    // Predicated region
    $region2: #{tpu_custom_call.1} parent=1 // pred_check
      _
    $region3: #{tpu_custom_call.1} parent=1 // pred_check_branch
      %10 = sbr.rel (0) target = $region5
    $region4: #{tpu_custom_call.1} parent=1 // pred_region
      %s12 = ssub.s32 1024, 1024
      %13 = vsyncadd [#allocation3], %s12
      %s14 = sshll.u32 [#allocation2], 4
      %s15 = int_to_ptr.vmem [resolvable:$true] %s14
      %20 = dma.hbm_to_vmem [thread:$0]  %s0, 1024, %s15, [#allocation3], 128, 128, 8
    $region5: #{tpu_custom_call.1} parent=1 // pred_fallthru
      _
    // Predicated region
    $region6: #{tpu_custom_call.1} parent=1 // pred_check
      _
    $region7: #{tpu_custom_call.1} parent=1 // pred_check_branch
      %22 = sbr.rel (0) target = $region9
    $region8: #{tpu_custom_call.1} parent=1 // pred_region
      _
    $region9: #{tpu_custom_call.1} parent=1 // pred_fallthru
      _
    // Predicated region
    $region10: #{tpu_custom_call.1} parent=1 // pred_check
      _
    $region11: #{tpu_custom_call.1} parent=1 // pred_check_branch
      %24 = sbr.rel (0) target = $region13
    $region12: #{tpu_custom_call.1} parent=1 // pred_region
      %25 = dma.done [#allocation3], 1024
    $region13: #{tpu_custom_call.1} parent=1 // pred_fallthru
      _
    %v26 = vld [vmem:[#allocation2] sm:$0xff]
    %v27 = vld [vmem:[#allocation2 + $0x8] sm:$0xff]
    %v28 = vld [vmem:[#allocation2 + $0x10] sm:$0xff]
    %v29 = vld [vmem:[#allocation2 + $0x18] sm:$0xff]
    %v30 = vld [vmem:[#allocation2 + $0x20] sm:$0xff]
    %v31 = vld [vmem:[#allocation2 + $0x28] sm:$0xff]
    %v32 = vld [vmem:[#allocation2 + $0x30] sm:$0xff]
    %v33 = vld [vmem:[#allocation2 + $0x38] sm:$0xff]
    %v34 = vmul.f32 %v26, 0.5
    %v35 = vmul.f32 %v27, 0.5
    %v36 = vmul.f32 %v28, 0.5
    %v37 = vmul.f32 %v29, 0.5
    %v38 = vmul.f32 %v30, 0.5
    %v39 = vmul.f32 %v31, 0.5
    %v40 = vmul.f32 %v32, 0.5
    %v41 = vmul.f32 %v33, 0.5
    %v42 = vtanh.pop %v34
    %v43 = vtanh.pop %v35
    %v44 = vtanh.pop %v36
    %v45 = vtanh.pop %v37
    %v46 = vtanh.pop %v38
    %v47 = vtanh.pop %v39
    %v48 = vtanh.pop %v40
    %v49 = vtanh.pop %v41
    %v50 = vld [vmem:[%s1] sm:$0x1]
    %vm51 = vcmp.ne.f32.partialorder %v50, 0.0
    %v52 = vsel %vm51, 1, 0
    %v53 = vlaneseq
    %v54 = vshrl.u32 %v53, 7
    %v55 = vsub.s32 0, %v54
    %v56 = vrot.slane %v52, %v55
    %vm57 = vcmp.eq.s32.totalorder %v56, 1
    %v58 = vsel %vm57, %v42, %v26
    %v59 = vsel %vm57, %v43, %v27
    %v60 = vsel %vm57, %v44, %v28
    %v61 = vsel %vm57, %v45, %v29
    %v62 = vsel %vm57, %v46, %v30
    %v63 = vsel %vm57, %v47, %v31
    %v64 = vsel %vm57, %v48, %v32
    %v65 = vsel %vm57, %v49, %v33
    %66 = vst [vmem:[#allocation5] sm:$0xff] %v58
    %67 = vst [vmem:[#allocation5 + $0x8] sm:$0xff] %v59
    %68 = vst [vmem:[#allocation5 + $0x10] sm:$0xff] %v60
    %69 = vst [vmem:[#allocation5 + $0x18] sm:$0xff] %v61
    %70 = vst [vmem:[#allocation5 + $0x20] sm:$0xff] %v62
    %71 = vst [vmem:[#allocation5 + $0x28] sm:$0xff] %v63
    %72 = vst [vmem:[#allocation5 + $0x30] sm:$0xff] %v64
    %73 = vst [vmem:[#allocation5 + $0x38] sm:$0xff] %v65
    // Predicated region
    $region14: #{tpu_custom_call.1} parent=1 // pred_check
      _
    $region15: #{tpu_custom_call.1} parent=1 // pred_check_branch
      %75 = sbr.rel (0) target = $region17
    $region16: #{tpu_custom_call.1} parent=1 // pred_region
      %s77 = ssub.s32 1024, 1024
      %78 = vsyncadd [#allocation4], %s77
      %s79 = sshll.u32 [#allocation5], 4
      %s80 = int_to_ptr.vmem [resolvable:$true] %s79
      %85 = dma.vmem_to_hbm [thread:$0]  %s80, 1024, %s2, [#allocation4], 128, 128, 8
    $region17: #{tpu_custom_call.1} parent=1 // pred_fallthru
      _
    // Predicated region
    $region18: #{tpu_custom_call.1} parent=1 // pred_check
      _
    $region19: #{tpu_custom_call.1} parent=1 // pred_check_branch
      %87 = sbr.rel (0) target = $region21
    $region20: #{tpu_custom_call.1} parent=1 // pred_region
      %88 = dma.done [#allocation4], 1024
    $region21: #{tpu_custom_call.1} parent=1 // pred_fallthru
      _
    %89 = vsyncpa [#allocation3], 1
    %90 = vsyncpa [#allocation4], 1

</llo_original>
